<compile_context>
chip_gen: v7x
topology: tpu7x:2x2x1
jax: 0.10.0
libtpu: 0.0.40
codegen_flags: <defaults>
</compile_context>

<pallas_src>
import math

import jax
import jax.numpy as jnp
from jax.experimental import pallas as pl
from jax.experimental.pallas import tpu as pltpu

ACTION_SIZE = 4
STATE_SIZE = 6 * 2   # 12
HIDDEN = 128
HEAD_W = 8           # [pi(4) | v(1) | 3 zero pad lanes]


def a2c_kernel(x_ref, w1_ref, w2_ref, wh_ref, b_ref, out_ref):
    # b_ref is the packed (1, 2*128 + 8) f32 bias: [b1 | b2 | b_head]
    b1 = b_ref[:, 0:HIDDEN]
    b2 = b_ref[:, HIDDEN:2 * HIDDEN]
    bh = b_ref[:, 2 * HIDDEN:2 * HIDDEN + HEAD_W]

    # in-kernel cast: x arrives f32 from HBM, VPU cast is free here
    x = x_ref[...].astype(jnp.bfloat16)                               # (TB, 12)

    # d1 + relu  (bf16 x bf16 -> f32 accumulate on the MXU)
    h1 = jnp.dot(x, w1_ref[...], preferred_element_type=jnp.float32) + b1
    h1 = jnp.maximum(h1, 0.0).astype(jnp.bfloat16)

    # d2 + relu
    h2 = jnp.dot(h1, w2_ref[...], preferred_element_type=jnp.float32) + b2
    h2 = jnp.maximum(h2, 0.0).astype(jnp.bfloat16)

    # fused narrow heads: columns [0:4] = policy logits, column [4] = value, rest = 0
    head = jnp.dot(h2, wh_ref[...], preferred_element_type=jnp.float32) + bh  # (TB, 8)

    col = jax.lax.broadcasted_iota(jnp.int32, head.shape, 1)
    is_pi = col < ACTION_SIZE
    is_v = col == ACTION_SIZE

    # masked, numerically-stable softmax over the 4 policy lanes only
    logits = jnp.where(is_pi, head, -jnp.inf)
    m = jnp.max(logits, axis=1, keepdims=True)
    e = jnp.where(is_pi, jnp.exp(logits - m), 0.0)
    s = jnp.sum(e, axis=1, keepdims=True)
    pi = e * pl.reciprocal(s, approx=False)   # exact (approx vrcp breaks 1e-5 sum-to-1)

    # narrow output slab: [pi(4) | v(1) | zeros(3)]
    out_ref[...] = pi + jnp.where(is_v, head, 0.0)


def a2c_forward(x, kparams, tb=None):
    """x: (B, STATE_SIZE) f32.  kparams: output of pack_params().  Returns (pi, v)."""
    B = x.shape[0]
    if tb is None:
        # round up to the 8-sublane granule; cap at 4096 (~6 MB VMEM incl. f32
        # temporaries and double-buffered x/out blocks -> fits v5e's 16 MiB).
        tb = min(4096, pl.cdiv(B, 8) * 8)
        # v7x has 2 TensorCores: for moderate/large batches keep >= 2 tiles so
        # the "parallel" grid axis feeds both cores. No-op for 1-TC v5e/v6e.
        if B >= 64 and pl.cdiv(B, tb) < 2:
            tb = pl.cdiv(pl.cdiv(B, 2), 8) * 8
    nb = pl.cdiv(B, tb)   # grid over-covers B; partial last block is masked by Pallas

    cost = pl.CostEstimate(
        flops=2 * B * (STATE_SIZE * HIDDEN + HIDDEN * HIDDEN + HIDDEN * HEAD_W),
        transcendentals=B * ACTION_SIZE,
        bytes_accessed=(B * (STATE_SIZE * 4 + HEAD_W * 4)
                        + 2 * (STATE_SIZE * HIDDEN + HIDDEN * HIDDEN + HIDDEN * HEAD_W)
                        + 4 * (2 * HIDDEN + HEAD_W)),
    )

    out = pl.pallas_call(
        a2c_kernel,
        out_shape=jax.ShapeDtypeStruct((B, HEAD_W), jnp.float32),
        grid_spec=pltpu.PrefetchScalarGridSpec(
            num_scalar_prefetch=0,
            grid=(nb,),
            in_specs=[
                pl.BlockSpec((tb, STATE_SIZE), lambda i: (i, 0)),        # x: tiled over batch (f32)
                pl.BlockSpec((STATE_SIZE, HIDDEN), lambda i: (0, 0)),    # w1: resident
                pl.BlockSpec((HIDDEN, HIDDEN), lambda i: (0, 0)),        # w2: resident
                pl.BlockSpec((HIDDEN, HEAD_W), lambda i: (0, 0)),        # fused narrow head: resident
                pl.BlockSpec((1, 2 * HIDDEN + HEAD_W), lambda i: (0, 0)),  # packed biases: resident
            ],
            out_specs=pl.BlockSpec((tb, HEAD_W), lambda i: (i, 0)),
        ),
        compiler_params=pltpu.CompilerParams(
            dimension_semantics=("parallel",),   # shard batch tiles across TCs (v7x)
        ),
        cost_estimate=cost,
    )(x, kparams["w1"], kparams["w2"], kparams["wh"], kparams["b"])

    pi = out[:, :ACTION_SIZE]
    v = out[:, ACTION_SIZE:ACTION_SIZE + 1]
    return pi, v


def init_params(key):
    """Deterministic init mimicking PyTorch Linear default (uniform +-1/sqrt(fan_in))."""
    def linear(key, fan_in, fan_out):
        kw, kb = jax.random.split(key)
        bound = 1.0 / math.sqrt(fan_in)
        # stored as (in, out) so the kernel can do x @ W
        w = jax.random.uniform(kw, (fan_in, fan_out), jnp.float32, -bound, bound)
        b = jax.random.uniform(kb, (1, fan_out), jnp.float32, -bound, bound)
        return w, b

    k1, k2, k3, k4 = jax.random.split(key, 4)
    w1, b1 = linear(k1, STATE_SIZE, HIDDEN)
    w2, b2 = linear(k2, HIDDEN, HIDDEN)
    wpi, bpi = linear(k3, HIDDEN, ACTION_SIZE)
    wv, bv = linear(k4, HIDDEN, 1)
    return {"w1": w1, "b1": b1, "w2": w2, "b2": b2,
            "wpi": wpi, "bpi": bpi, "wv": wv, "bv": bv}


def pack_params(p):
    """Build the fused narrow-head bf16 weights + packed f32 biases the kernel expects."""
    wh = jnp.zeros((HIDDEN, HEAD_W), jnp.float32)
    wh = wh.at[:, :ACTION_SIZE].set(p["wpi"])
    wh = wh.at[:, ACTION_SIZE:ACTION_SIZE + 1].set(p["wv"])
    bh = jnp.zeros((1, HEAD_W), jnp.float32)
    bh = bh.at[:, :ACTION_SIZE].set(p["bpi"])
    bh = bh.at[:, ACTION_SIZE:ACTION_SIZE + 1].set(p["bv"])
    b_packed = jnp.concatenate([p["b1"], p["b2"], bh], axis=1)        # (1, 264) f32
    return {
        "w1": p["w1"].astype(jnp.bfloat16),
        "w2": p["w2"].astype(jnp.bfloat16),
        "wh": wh.astype(jnp.bfloat16),
        "b": b_packed,
    }


def reference_forward(x, p):
    """Pure-JAX reference mirroring the kernel's precision (bf16 inputs, f32 accumulate)."""
    xb = x.astype(jnp.bfloat16)
    w1 = p["w1"].astype(jnp.bfloat16)
    w2 = p["w2"].astype(jnp.bfloat16)
    wpi = p["wpi"].astype(jnp.bfloat16)
    wv = p["wv"].astype(jnp.bfloat16)

    h1 = jnp.maximum(jnp.dot(xb, w1, preferred_element_type=jnp.float32) + p["b1"], 0.0)
    h1 = h1.astype(jnp.bfloat16)
    h2 = jnp.maximum(jnp.dot(h1, w2, preferred_element_type=jnp.float32) + p["b2"], 0.0)
    h2 = h2.astype(jnp.bfloat16)
    logits = jnp.dot(h2, wpi, preferred_element_type=jnp.float32) + p["bpi"]
    pi = jax.nn.softmax(logits, axis=1)
    v = jnp.dot(h2, wv, preferred_element_type=jnp.float32) + p["bv"]
    return pi, v


if __name__ == "__main__":
    key = jax.random.PRNGKey(0)
    kx, kparam = jax.random.split(key)

    params = init_params(kparam)
    kparams = pack_params(params)

    # --- small-shape check (single tile, default tb heuristic) ---
    B = 8
    x = jax.random.normal(kx, (B, STATE_SIZE), dtype=jnp.float32)
    pi, v = a2c_forward(x, kparams)
    jax.block_until_ready((pi, v))

    pi_ref, v_ref = reference_forward(x, params)
    assert pi.shape == (B, ACTION_SIZE) and v.shape == (B, 1)
    assert jnp.allclose(pi, pi_ref, atol=1e-4, rtol=1e-4)
    assert jnp.allclose(v, v_ref, atol=1e-4, rtol=1e-4)
    assert jnp.allclose(jnp.sum(pi, axis=1), 1.0, atol=1e-5)

    # --- exercise the batch grid + masked partial last tile (4 tiles of 64, 56 OOB rows) ---
    B2 = 200
    x2 = jax.random.normal(jax.random.fold_in(kx, 1), (B2, STATE_SIZE), dtype=jnp.float32)
    pi2, v2 = a2c_forward(x2, kparams, tb=64)
    jax.block_until_ready((pi2, v2))

    pi2_ref, v2_ref = reference_forward(x2, params)
    assert pi2.shape == (B2, ACTION_SIZE) and v2.shape == (B2, 1)
    assert jnp.allclose(pi2, pi2_ref, atol=1e-4, rtol=1e-4)
    assert jnp.allclose(v2, v2_ref, atol=1e-4, rtol=1e-4)

    # --- default heuristic on a moderate batch (>=2 parallel tiles for v7x) ---
    B3 = 96
    x3 = jax.random.normal(jax.random.fold_in(kx, 2), (B3, STATE_SIZE), dtype=jnp.float32)
    pi3, v3 = a2c_forward(x3, kparams)
    jax.block_until_ready((pi3, v3))
    pi3_ref, v3_ref = reference_forward(x3, params)
    assert jnp.allclose(pi3, pi3_ref, atol=1e-4, rtol=1e-4)
    assert jnp.allclose(v3, v3_ref, atol=1e-4, rtol=1e-4)

    print("KERNEL_OK")
</pallas_src>

<mosaic_0001>
module attributes {stable_mosaic.version = 11 : i64} {
  func.func @a2c_kernel(%arg0: i32, %arg1: memref<8x12xf32, #tpu.memory_space<vmem>>, %arg2: memref<12x128xbf16, #tpu.memory_space<vmem>>, %arg3: memref<128x128xbf16, #tpu.memory_space<vmem>>, %arg4: memref<128x8xbf16, #tpu.memory_space<vmem>>, %arg5: memref<1x264xf32, #tpu.memory_space<vmem>>, %arg6: memref<8x8xf32, #tpu.memory_space<vmem>>) attributes {dimension_semantics = [#tpu.dimension_semantics<parallel>], iteration_bounds = array<i64: 1>, scalar_prefetch = 0 : i64, scratch_operands = 0 : i64, tpu.core_type = #tpu.core_type<tc>, window_params = [{transform_indices = @transform_0, window_bounds = array<i64: 8, 12>}, {pipeline_mode = #tpu.pipeline_mode<synchronous>, transform_indices = @transform_1, window_bounds = array<i64: 12, 128>}, {pipeline_mode = #tpu.pipeline_mode<synchronous>, transform_indices = @transform_2, window_bounds = array<i64: 128, 128>}, {pipeline_mode = #tpu.pipeline_mode<synchronous>, transform_indices = @transform_3, window_bounds = array<i64: 128, 8>}, {pipeline_mode = #tpu.pipeline_mode<synchronous>, transform_indices = @transform_4, window_bounds = array<i64: 1, 264>}, {transform_indices = @transform_5, window_bounds = array<i64: 8, 8>}]} {
    %c0 = arith.constant 0 : index
    %c0_0 = arith.constant 0 : index
    %0 = vector.load %arg5[%c0, %c0_0] : memref<1x264xf32, #tpu.memory_space<vmem>>, vector<1x128xf32>
    %c0_1 = arith.constant 0 : index
    %c128 = arith.constant 128 : index
    %1 = vector.load %arg5[%c0_1, %c128] : memref<1x264xf32, #tpu.memory_space<vmem>>, vector<1x128xf32>
    %c0_2 = arith.constant 0 : index
    %c256 = arith.constant 256 : index
    %2 = vector.load %arg5[%c0_2, %c256] : memref<1x264xf32, #tpu.memory_space<vmem>>, vector<1x8xf32>
    %c0_3 = arith.constant 0 : index
    %c0_4 = arith.constant 0 : index
    %3 = vector.load %arg1[%c0_3, %c0_4] : memref<8x12xf32, #tpu.memory_space<vmem>>, vector<8x12xf32>
    %4 = arith.truncf %3 : vector<8x12xf32> to vector<8x12xbf16>
    %c0_5 = arith.constant 0 : index
    %c0_6 = arith.constant 0 : index
    %5 = vector.load %arg2[%c0_5, %c0_6] : memref<12x128xbf16, #tpu.memory_space<vmem>>, vector<12x128xbf16>
    %cst = arith.constant dense<0.000000e+00> : vector<8x128xf32>
    %6 = tpu.matmul %4, %5, %cst {dimension_numbers = #tpu.dot_dimension_numbers<[1], [0], [0], [1], [0, 0, 1, 1], [], []>} : vector<8x12xbf16>, vector<12x128xbf16>, vector<8x128xf32> -> vector<8x128xf32>
    %7 = vector.broadcast %0 : vector<1x128xf32> to vector<8x128xf32>
    %8 = arith.addf %6, %7 : vector<8x128xf32>
    %cst_7 = arith.constant 0.000000e+00 : f32
    %9 = vector.broadcast %cst_7 : f32 to vector<8x128xf32>
    %10 = arith.maximumf %8, %9 : vector<8x128xf32>
    %11 = arith.truncf %10 : vector<8x128xf32> to vector<8x128xbf16>
    %c0_8 = arith.constant 0 : index
    %c0_9 = arith.constant 0 : index
    %12 = vector.load %arg3[%c0_8, %c0_9] : memref<128x128xbf16, #tpu.memory_space<vmem>>, vector<128x128xbf16>
    %cst_10 = arith.constant dense<0.000000e+00> : vector<8x128xf32>
    %13 = tpu.matmul %11, %12, %cst_10 {dimension_numbers = #tpu.dot_dimension_numbers<[1], [0], [0], [1], [0, 0, 1, 1], [], []>} : vector<8x128xbf16>, vector<128x128xbf16>, vector<8x128xf32> -> vector<8x128xf32>
    %14 = vector.broadcast %1 : vector<1x128xf32> to vector<8x128xf32>
    %15 = arith.addf %13, %14 : vector<8x128xf32>
    %cst_11 = arith.constant 0.000000e+00 : f32
    %16 = vector.broadcast %cst_11 : f32 to vector<8x128xf32>
    %17 = arith.maximumf %15, %16 : vector<8x128xf32>
    %18 = arith.truncf %17 : vector<8x128xf32> to vector<8x128xbf16>
    %c0_12 = arith.constant 0 : index
    %c0_13 = arith.constant 0 : index
    %19 = vector.load %arg4[%c0_12, %c0_13] : memref<128x8xbf16, #tpu.memory_space<vmem>>, vector<128x8xbf16>
    %cst_14 = arith.constant dense<0.000000e+00> : vector<8x8xf32>
    %20 = tpu.matmul %18, %19, %cst_14 {dimension_numbers = #tpu.dot_dimension_numbers<[1], [0], [0], [1], [0, 0, 1, 1], [], []>} : vector<8x128xbf16>, vector<128x8xbf16>, vector<8x8xf32> -> vector<8x8xf32>
    %21 = vector.broadcast %2 : vector<1x8xf32> to vector<8x8xf32>
    %22 = arith.addf %20, %21 : vector<8x8xf32>
    %23 = tpu.iota {dimensions = array<i32: 1>} : vector<8x8xi32>
    %c4_i32 = arith.constant 4 : i32
    %24 = vector.broadcast %c4_i32 : i32 to vector<8x8xi32>
    %25 = arith.cmpi slt, %23, %24 : vector<8x8xi32>
    %c4_i32_15 = arith.constant 4 : i32
    %26 = vector.broadcast %c4_i32_15 : i32 to vector<8x8xi32>
    %27 = arith.cmpi eq, %23, %26 : vector<8x8xi32>
    %cst_16 = arith.constant 0xFF800000 : f32
    %28 = vector.broadcast %cst_16 : f32 to vector<8x8xf32>
    %29 = arith.select %25, %22, %28 : vector<8x8xi1>, vector<8x8xf32>
    %cst_17 = arith.constant dense<0xFF800000> : vector<8xf32>
    %30 = vector.multi_reduction <maximumf>, %29, %cst_17 [1] : vector<8x8xf32> to vector<8xf32>
    %31 = vector.shape_cast %30 : vector<8xf32> to vector<8x1xf32>
    %32 = vector.broadcast %31 : vector<8x1xf32> to vector<8x8xf32>
    %33 = arith.subf %29, %32 : vector<8x8xf32>
    %34 = math.exp %33 : vector<8x8xf32>
    %cst_18 = arith.constant 0.000000e+00 : f32
    %35 = vector.broadcast %cst_18 : f32 to vector<8x8xf32>
    %36 = arith.select %25, %34, %35 : vector<8x8xi1>, vector<8x8xf32>
    %cst_19 = arith.constant dense<0.000000e+00> : vector<8xf32>
    %37 = vector.multi_reduction <add>, %36, %cst_19 [1] : vector<8x8xf32> to vector<8xf32>
    %38 = vector.shape_cast %37 : vector<8xf32> to vector<8x1xf32>
    %39 = tpu.reciprocal %38 : vector<8x1xf32> -> vector<8x1xf32>
    %40 = vector.broadcast %39 : vector<8x1xf32> to vector<8x8xf32>
    %41 = arith.mulf %36, %40 : vector<8x8xf32>
    %cst_20 = arith.constant 0.000000e+00 : f32
    %42 = vector.broadcast %cst_20 : f32 to vector<8x8xf32>
    %43 = arith.select %27, %22, %42 : vector<8x8xi1>, vector<8x8xf32>
    %44 = arith.addf %41, %43 : vector<8x8xf32>
    %c0_21 = arith.constant 0 : index
    %c0_22 = arith.constant 0 : index
    %45 = vector.load %arg6[%c0_21, %c0_22] : memref<8x8xf32, #tpu.memory_space<vmem>>, vector<8x8xf32>
    tpu.vector_store %arg6[%c0_21, %c0_22], %44 {strides = array<i32>} : memref<8x8xf32, #tpu.memory_space<vmem>>, vector<8x8xf32>,
    return
  }
  func.func @transform_0(%arg0: i32) -> (i32, i32) {
    %c0_i32 = arith.constant 0 : i32
    %c0_i32_0 = arith.constant 0 : i32
    return %arg0, %c0_i32 : i32, i32
  }
  func.func @transform_1(%arg0: i32) -> (i32, i32) {
    %c0_i32 = arith.constant 0 : i32
    %c0_i32_0 = arith.constant 0 : i32
    %c0_i32_1 = arith.constant 0 : i32
    return %c0_i32, %c0_i32_0 : i32, i32
  }
  func.func @transform_2(%arg0: i32) -> (i32, i32) {
    %c0_i32 = arith.constant 0 : i32
    %c0_i32_0 = arith.constant 0 : i32
    %c0_i32_1 = arith.constant 0 : i32
    return %c0_i32, %c0_i32_0 : i32, i32
  }
  func.func @transform_3(%arg0: i32) -> (i32, i32) {
    %c0_i32 = arith.constant 0 : i32
    %c0_i32_0 = arith.constant 0 : i32
    %c0_i32_1 = arith.constant 0 : i32
    return %c0_i32, %c0_i32_0 : i32, i32
  }
  func.func @transform_4(%arg0: i32) -> (i32, i32) {
    %c0_i32 = arith.constant 0 : i32
    %c0_i32_0 = arith.constant 0 : i32
    %c0_i32_1 = arith.constant 0 : i32
    return %c0_i32, %c0_i32_0 : i32, i32
  }
  func.func @transform_5(%arg0: i32) -> (i32, i32) {
    %c0_i32 = arith.constant 0 : i32
    %c0_i32_0 = arith.constant 0 : i32
    return %arg0, %c0_i32 : i32, i32
  }
}

</mosaic_0001>

<llo_original>
// kernel: tpu_custom_call.1
$region0: #{tpu_custom_call.1}
  #allocation0 [shape = 'u32[]', space=smem, size = 0x4, offset = 0x4, fixed_abs, tag = 'smem constant byte address 0x4 - core index']
  #allocation1 [shape = 'u32[144,128]{1,0:T(1,128)}', space=vmem, size = 0x12000, scoped, tag = 'internal scratch']
  %s0 = inlined_call_operand.vmem [shape: f32[8,12], index: 0, kind: input, shape index: {}]
  %s1 = inlined_call_operand.hbm [shape: bf16[12,128], index: 1, kind: input, shape index: {}]
  %s2 = inlined_call_operand.vmem [shape: bf16[128,128], index: 2, kind: input, shape index: {}]
  %s3 = inlined_call_operand.vmem [shape: bf16[128,8], index: 3, kind: input, shape index: {}]
  %s4 = inlined_call_operand.vmem [shape: f32[1,264], index: 4, kind: input, shape index: {}]
  %s5 = inlined_call_operand.hbm [shape: f32[8,8], index: 5, kind: output, shape index: {}]
  %s6 = sld [smem:[#allocation0]]
  $region34: #{tpu_custom_call.1} parent=0
    _
  %s8 = ssub.s32 1, %s6
  %s9 = scalar_select 0, %s8, %s6
  $region1: #{tpu_custom_call.1} parent=0
    #allocation2 [shape = 'u8[4096]{0}', space=vmem, size = 0x1000, scoped, tag = 'input window, operand 1, single buffered']
    #allocation3 [shape = 's32[1]{0}', space=sflag, size = 0x4, scoped, tag = 'scoped memory for tpu_custom_call.1']
    #allocation4 [shape = 's32[1]{0}', space=sflag, size = 0x4, scoped, tag = 'scoped memory for tpu_custom_call.1']
    #allocation5 [shape = 'u8[4096]{0}', space=vmem, size = 0x1000, scoped, tag = 'output window, operand 0, single buffered']
    %10 = vsyncpa [#allocation3], 0
    %11 = vsyncpa [#allocation4], 0
    // Predicated region
    $region2: #{tpu_custom_call.1} parent=1 // pred_check
      _
    $region3: #{tpu_custom_call.1} parent=1 // pred_check_branch
      %13 = sbr.rel (0) target = $region5
    $region4: #{tpu_custom_call.1} parent=1 // pred_region
      _
    $region5: #{tpu_custom_call.1} parent=1 // pred_fallthru
      _
    // Predicated region
    $region6: #{tpu_custom_call.1} parent=1 // pred_check
      _
    $region7: #{tpu_custom_call.1} parent=1 // pred_check_branch
      %15 = sbr.rel (0) target = $region9
    $region8: #{tpu_custom_call.1} parent=1 // pred_region
      %s17 = ssub.s32 128, 128
      %18 = vsyncadd [#allocation3], %s17
      %s19 = sshll.u32 [#allocation2], 4
      %s20 = int_to_ptr.vmem [resolvable:$true] %s19
      %25 = dma.hbm_to_vmem [thread:$0]  %s1, 128, %s20, [#allocation3], 64, 64, 4
    $region9: #{tpu_custom_call.1} parent=1 // pred_fallthru
      _
    // Predicated region
    $region10: #{tpu_custom_call.1} parent=1 // pred_check
      _
    $region11: #{tpu_custom_call.1} parent=1 // pred_check_branch
      %27 = sbr.rel (0) target = $region13
    $region12: #{tpu_custom_call.1} parent=1 // pred_region
      _
    $region13: #{tpu_custom_call.1} parent=1 // pred_fallthru
      _
    // Predicated region
    $region14: #{tpu_custom_call.1} parent=1 // pred_check
      _
    $region15: #{tpu_custom_call.1} parent=1 // pred_check_branch
      %29 = sbr.rel (0) target = $region17
    $region16: #{tpu_custom_call.1} parent=1 // pred_region
      _
    $region17: #{tpu_custom_call.1} parent=1 // pred_fallthru
      _
    // Predicated region
    $region18: #{tpu_custom_call.1} parent=1 // pred_check
      _
    $region19: #{tpu_custom_call.1} parent=1 // pred_check_branch
      %31 = sbr.rel (0) target = $region21
    $region20: #{tpu_custom_call.1} parent=1 // pred_region
      _
    $region21: #{tpu_custom_call.1} parent=1 // pred_fallthru
      _
    // Predicated region
    $region22: #{tpu_custom_call.1} parent=1 // pred_check
      _
    $region23: #{tpu_custom_call.1} parent=1 // pred_check_branch
      %33 = sbr.rel (0) target = $region25
    $region24: #{tpu_custom_call.1} parent=1 // pred_region
      %34 = dma.done [#allocation3], 128
    $region25: #{tpu_custom_call.1} parent=1 // pred_fallthru
      _
    %v36 = vld [vmem:[%s4] sm:$0x1]
    %v37 = vld [vmem:[%s4 + $0x1] sm:$0x1]
    %v38 = vld [vmem:[%s4 + $0x2] sm:$0x1]
    %v39 = vld [vmem:[%s0] sm:$0xff]
    %v40 = vpack.c.bf16 %v39, %v39
    %v41 = vld [vmem:[#allocation2] sm:$0xf]
    %v42 = vld [vmem:[#allocation2 + $0x4] sm:$0x3]
    %v44 = vlaneseq
    %v45 = vshrl.u32 %v44, 7
    %v46 = vsub.s32 0, %v45
    %v47 = vrot.slane %v36, %v46
    %v51 = vunpack.c.l.b16 %v41
    %v52 = vunpack.c.l.b16 %v42
    %v53 = vpack.c.b16 %v52, %v51
    %vm54 = vcmask 97280
    %v56 = vsel %vm54, %v40, 0
    %vm58 = vcmask 1045504
    %v60 = vsel %vm58, %v53, 0
    %62 = vmatprep.subr.bf16.mxu0 0
    %63 = vmatpush1.bf16.msra.mxu0 %v60
    %64 = vmatprep.subr.bf16.mxu0 0
    %65 = vmatpush1.bf16.msra.mxu0 0
    %66 = vmatprep.subr.bf16.mxu0 0
    %67 = vmatpush1.bf16.msra.mxu0 0
    %68 = vmatprep.subr.bf16.mxu0 0
    %69 = vmatpush1.bf16.msra.mxu0 0
    %70 = vmatprep.subr.bf16.mxu0 0
    %71 = vmatpush1.bf16.msra.mxu0 0
    %72 = vmatprep.subr.bf16.mxu0 0
    %73 = vmatpush1.bf16.msra.mxu0 0
    %74 = vmatprep.subr.bf16.mxu0 0
    %75 = vmatpush1.bf16.msra.mxu0 0
    %76 = vmatprep.subr.bf16.mxu0 0
    %77 = vmatpush1.bf16.msra.mxu0 0
    %78 = vmatprep.subr.bf16.mxu0 0
    %79 = vmatpush1.bf16.msra.mxu0 0
    %80 = vmatprep.subr.bf16.mxu0 0
    %81 = vmatpush1.bf16.msra.mxu0 0
    %82 = vmatprep.subr.bf16.mxu0 0
    %83 = vmatpush1.bf16.msra.mxu0 0
    %84 = vmatprep.subr.bf16.mxu0 0
    %85 = vmatpush1.bf16.msra.mxu0 0
    %86 = vmatprep.subr.bf16.mxu0 0
    %87 = vmatpush1.bf16.msra.mxu0 0
    %88 = vmatprep.subr.bf16.mxu0 0
    %89 = vmatpush1.bf16.msra.mxu0 0
    %90 = vmatprep.subr.bf16.mxu0 0
    %91 = vmatpush1.bf16.msra.mxu0 0
    %92 = vmatprep.subr.bf16.mxu0 0
    %93 = vmatpush1.bf16.msra.mxu0 0
    %94 = vmatprep.mubr.bf16.mxu0 0
    %95 = vmatmul.mubr.bf16.gmra.mrb[0].mxu0 %v56
    %v96 = vpop.f32.mrb[0].mxu0
    %v97 = vadd.f32 %v47, %v96
    %v98 = vpop.f32.mrb[0].mxu0
    %v99 = vpop.f32.mrb[0].mxu0
    %v100 = vpop.f32.mrb[0].mxu0
    %101 = vdwg.mxu0
    %v102 = vmax.f32 %v97, 0.0
    %v103 = vpack.c.bf16 %v102, %v102
    %v104 = vld [vmem:[%s2] sm:$0xf]
    %v105 = vld [vmem:[%s2 + $0x4] sm:$0xf]
    %v106 = vld [vmem:[%s2 + $0x8] sm:$0xf]
    %v107 = vld [vmem:[%s2 + $0xc] sm:$0xf]
    %v108 = vld [vmem:[%s2 + $0x10] sm:$0xf]
    %v109 = vld [vmem:[%s2 + $0x14] sm:$0xf]
    %v110 = vld [vmem:[%s2 + $0x18] sm:$0xf]
    %v111 = vld [vmem:[%s2 + $0x1c] sm:$0xf]
    %v112 = vld [vmem:[%s2 + $0x20] sm:$0xf]
    %v113 = vld [vmem:[%s2 + $0x24] sm:$0xf]
    %v114 = vld [vmem:[%s2 + $0x28] sm:$0xf]
    %v115 = vld [vmem:[%s2 + $0x2c] sm:$0xf]
    %v116 = vld [vmem:[%s2 + $0x30] sm:$0xf]
    %v117 = vld [vmem:[%s2 + $0x34] sm:$0xf]
    %v118 = vld [vmem:[%s2 + $0x38] sm:$0xf]
    %v119 = vld [vmem:[%s2 + $0x3c] sm:$0xf]
    %v121 = vlaneseq
    %v122 = vshrl.u32 %v121, 7
    %v123 = vsub.s32 0, %v122
    %v124 = vrot.slane %v37, %v123
    %v142 = vunpack.c.l.b16 %v104
    %v143 = vunpack.c.l.b16 %v105
    %v144 = vunpack.c.l.b16 %v106
    %v145 = vunpack.c.l.b16 %v107
    %v146 = vunpack.c.l.b16 %v108
    %v147 = vunpack.c.l.b16 %v109
    %v148 = vunpack.c.l.b16 %v110
    %v149 = vunpack.c.l.b16 %v111
    %v150 = vunpack.c.l.b16 %v112
    %v151 = vunpack.c.l.b16 %v113
    %v152 = vunpack.c.l.b16 %v114
    %v153 = vunpack.c.l.b16 %v115
    %v154 = vunpack.c.l.b16 %v116
    %v155 = vunpack.c.l.b16 %v117
    %v156 = vunpack.c.l.b16 %v118
    %v157 = vunpack.c.l.b16 %v119
    %v158 = vpack.c.b16 %v143, %v142
    %v159 = vpack.c.b16 %v145, %v144
    %v160 = vpack.c.b16 %v147, %v146
    %v161 = vpack.c.b16 %v149, %v148
    %v162 = vpack.c.b16 %v151, %v150
    %v163 = vpack.c.b16 %v153, %v152
    %v164 = vpack.c.b16 %v155, %v154
    %v165 = vpack.c.b16 %v157, %v156
    %174 = vmatprep.subr.bf16.mxu0 0
    %175 = vmatpush1.bf16.msra.mxu0 %v158
    %176 = vmatprep.subr.bf16.mxu0 0
    %177 = vmatpush1.bf16.msra.mxu0 %v159
    %178 = vmatprep.subr.bf16.mxu0 0
    %179 = vmatpush1.bf16.msra.mxu0 %v160
    %180 = vmatprep.subr.bf16.mxu0 0
    %181 = vmatpush1.bf16.msra.mxu0 %v161
    %182 = vmatprep.subr.bf16.mxu0 0
    %183 = vmatpush1.bf16.msra.mxu0 %v162
    %184 = vmatprep.subr.bf16.mxu0 0
    %185 = vmatpush1.bf16.msra.mxu0 %v163
    %186 = vmatprep.subr.bf16.mxu0 0
    %187 = vmatpush1.bf16.msra.mxu0 %v164
    %188 = vmatprep.subr.bf16.mxu0 0
    %189 = vmatpush1.bf16.msra.mxu0 %v165
    %190 = vmatprep.subr.bf16.mxu0 0
    %191 = vmatpush1.bf16.msra.mxu0 0
    %192 = vmatprep.subr.bf16.mxu0 0
    %193 = vmatpush1.bf16.msra.mxu0 0
    %194 = vmatprep.subr.bf16.mxu0 0
    %195 = vmatpush1.bf16.msra.mxu0 0
    %196 = vmatprep.subr.bf16.mxu0 0
    %197 = vmatpush1.bf16.msra.mxu0 0
    %198 = vmatprep.subr.bf16.mxu0 0
    %199 = vmatpush1.bf16.msra.mxu0 0
    %200 = vmatprep.subr.bf16.mxu0 0
    %201 = vmatpush1.bf16.msra.mxu0 0
    %202 = vmatprep.subr.bf16.mxu0 0
    %203 = vmatpush1.bf16.msra.mxu0 0
    %204 = vmatprep.subr.bf16.mxu0 0
    %205 = vmatpush1.bf16.msra.mxu0 0
    %206 = vmatprep.mubr.bf16.mxu0 0
    %207 = vmatmul.mubr.bf16.gmra.mrb[0].mxu0 %v103
    %v208 = vpop.f32.mrb[0].mxu0
    %v209 = vadd.f32 %v124, %v208
    %v210 = vpop.f32.mrb[0].mxu0
    %v211 = vpop.f32.mrb[0].mxu0
    %v212 = vpop.f32.mrb[0].mxu0
    %213 = vdwg.mxu0
    %v214 = vmax.f32 %v209, 0.0
    %v215 = vpack.c.bf16 %v214, %v214
    %v216 = vld [vmem:[%s3] sm:$0xf]
    %v217 = vld [vmem:[%s3 + $0x4] sm:$0xf]
    %v218 = vld [vmem:[%s3 + $0x8] sm:$0xf]
    %v219 = vld [vmem:[%s3 + $0xc] sm:$0xf]
    %v220 = vld [vmem:[%s3 + $0x10] sm:$0xf]
    %v221 = vld [vmem:[%s3 + $0x14] sm:$0xf]
    %v222 = vld [vmem:[%s3 + $0x18] sm:$0xf]
    %v223 = vld [vmem:[%s3 + $0x1c] sm:$0xf]
    %v224 = vld [vmem:[%s3 + $0x20] sm:$0xf]
    %v225 = vld [vmem:[%s3 + $0x24] sm:$0xf]
    %v226 = vld [vmem:[%s3 + $0x28] sm:$0xf]
    %v227 = vld [vmem:[%s3 + $0x2c] sm:$0xf]
    %v228 = vld [vmem:[%s3 + $0x30] sm:$0xf]
    %v229 = vld [vmem:[%s3 + $0x34] sm:$0xf]
    %v230 = vld [vmem:[%s3 + $0x38] sm:$0xf]
    %v231 = vld [vmem:[%s3 + $0x3c] sm:$0xf]
    %v233 = vlaneseq
    %v234 = vshrl.u32 %v233, 7
    %v235 = vsub.s32 0, %v234
    %v236 = vrot.slane %v38, %v235
    %v254 = vunpack.c.l.b16 %v216
    %v255 = vunpack.c.l.b16 %v217
    %v256 = vunpack.c.l.b16 %v218
    %v257 = vunpack.c.l.b16 %v219
    %v258 = vunpack.c.l.b16 %v220
    %v259 = vunpack.c.l.b16 %v221
    %v260 = vunpack.c.l.b16 %v222
    %v261 = vunpack.c.l.b16 %v223
    %v262 = vunpack.c.l.b16 %v224
    %v263 = vunpack.c.l.b16 %v225
    %v264 = vunpack.c.l.b16 %v226
    %v265 = vunpack.c.l.b16 %v227
    %v266 = vunpack.c.l.b16 %v228
    %v267 = vunpack.c.l.b16 %v229
    %v268 = vunpack.c.l.b16 %v230
    %v269 = vunpack.c.l.b16 %v231
    %v270 = vpack.c.b16 %v255, %v254
    %v271 = vpack.c.b16 %v257, %v256
    %v272 = vpack.c.b16 %v259, %v258
    %v273 = vpack.c.b16 %v261, %v260
    %v274 = vpack.c.b16 %v263, %v262
    %v275 = vpack.c.b16 %v265, %v264
    %v276 = vpack.c.b16 %v267, %v266
    %v277 = vpack.c.b16 %v269, %v268
    %286 = vmatprep.subr.bf16.mxu0 0
    %287 = vmatpush1.bf16.msra.mxu0 %v270
    %288 = vmatprep.subr.bf16.mxu0 0
    %289 = vmatpush1.bf16.msra.mxu0 %v271
    %290 = vmatprep.subr.bf16.mxu0 0
    %291 = vmatpush1.bf16.msra.mxu0 %v272
    %292 = vmatprep.subr.bf16.mxu0 0
    %293 = vmatpush1.bf16.msra.mxu0 %v273
    %294 = vmatprep.subr.bf16.mxu0 0
    %295 = vmatpush1.bf16.msra.mxu0 %v274
    %296 = vmatprep.subr.bf16.mxu0 0
    %297 = vmatpush1.bf16.msra.mxu0 %v275
    %298 = vmatprep.subr.bf16.mxu0 0
    %299 = vmatpush1.bf16.msra.mxu0 %v276
    %300 = vmatprep.subr.bf16.mxu0 0
    %301 = vmatpush1.bf16.msra.mxu0 %v277
    %302 = vmatprep.subr.bf16.mxu0 0
    %303 = vmatpush1.bf16.msra.mxu0 0
    %304 = vmatprep.subr.bf16.mxu0 0
    %305 = vmatpush1.bf16.msra.mxu0 0
    %306 = vmatprep.subr.bf16.mxu0 0
    %307 = vmatpush1.bf16.msra.mxu0 0
    %308 = vmatprep.subr.bf16.mxu0 0
    %309 = vmatpush1.bf16.msra.mxu0 0
    %310 = vmatprep.subr.bf16.mxu0 0
    %311 = vmatpush1.bf16.msra.mxu0 0
    %312 = vmatprep.subr.bf16.mxu0 0
    %313 = vmatpush1.bf16.msra.mxu0 0
    %314 = vmatprep.subr.bf16.mxu0 0
    %315 = vmatpush1.bf16.msra.mxu0 0
    %316 = vmatprep.subr.bf16.mxu0 0
    %317 = vmatpush1.bf16.msra.mxu0 0
    %318 = vmatprep.mubr.bf16.mxu0 0
    %319 = vmatmul.mubr.bf16.gmra.mrb[0].mxu0 %v215
    %v320 = vpop.f32.mrb[0].mxu0
    %v321 = vadd.f32 %v236, %v320
    %v322 = vpop.f32.mrb[0].mxu0
    %v323 = vpop.f32.mrb[0].mxu0
    %v324 = vpop.f32.mrb[0].mxu0
    %325 = vdwg.mxu0
    %v326 = vlaneseq
    %v327 = vand.u32 %v326, 127
    %vm328 = vcmp.lt.s32.totalorder %v327, 4
    %vm329 = vcmp.eq.s32.totalorder %v327, 4
    %v330 = vsel %vm328, %v321, -inf
    %vm331 = vcmask 64512
    %v332 = vsel %vm331, %v330, -inf
    %333 = vmax.xlane.f32.xlu0 %v332
    %v334 = vpop.xlane.xlu0 %333
    %v335 = vsub.f32 %v330, %v334
    %v336 = vmul.f32 %v335, 1.442695
    %v337 = vpow.pop %v336
    %v338 = vsel %vm328, %v337, 0.0
    %v339 = vsel %vm331, %v338, 0.0
    %340 = vadd.xlane.f32.xlu0 %v339
    %v341 = vpop.xlane.xlu0 %340
    %v342 = vrcp.pop %v341
    %v343 = vmul.f32 %v338, %v342
    %v344 = vsel %vm329, %v321, 0.0
    %v345 = vadd.f32 %v343, %v344
    %346 = vst.msk [vmem:[#allocation5] sm:$0xff] %vm331, %v345
    // Predicated region
    $region26: #{tpu_custom_call.1} parent=1 // pred_check
      _
    $region27: #{tpu_custom_call.1} parent=1 // pred_check_branch
      %348 = sbr.rel (0) target = $region29
    $region28: #{tpu_custom_call.1} parent=1 // pred_region
      %s350 = ssub.s32 128, 128
      %351 = vsyncadd [#allocation4], %s350
      %s353 = sshll.u32 [#allocation5], 4
      %s354 = int_to_ptr.vmem [resolvable:$true] %s353
      %356 = dma.vmem_to_hbm [thread:$0]  %s354, 128, %s5, [#allocation4]
    $region29: #{tpu_custom_call.1} parent=1 // pred_fallthru
      _
    // Predicated region
    $region30: #{tpu_custom_call.1} parent=1 // pred_check
      _
    $region31: #{tpu_custom_call.1} parent=1 // pred_check_branch
      %358 = sbr.rel (0) target = $region33
    $region32: #{tpu_custom_call.1} parent=1 // pred_region
      %359 = dma.done [#allocation4], 128
    $region33: #{tpu_custom_call.1} parent=1 // pred_fallthru
      _
    %360 = vsyncpa [#allocation3], 1
    %361 = vsyncpa [#allocation4], 1

</llo_original>
